<compile_context>
chip_gen: v7x
topology: tpu7x:2x2x1
jax: 0.10.0
libtpu: 0.0.40
codegen_flags: <defaults>
</compile_context>

<pallas_src>
import functools

import jax
import jax.numpy as jnp
from jax.experimental import pallas as pl
from jax.experimental.pallas import tpu as pltpu

LANE = 128     # TPU vreg lane width (last dim)
SUBLANE = 8    # TPU vreg sublane width (second-to-last dim)


def _round_up(n, m):
    return ((n + m - 1) // m) * m


def policy_kernel(x_ref, p1_ref, p2_ref, out_ref):
    in_p = p1_ref.shape[0] - 1    # static padded input width (multiple of 8)
    hid_p = p2_ref.shape[0] - 1   # static padded hidden width (multiple of 8)

    # layer 1: (B, Ip) @ (Ip, Hp) + (1, Hp), then ReLU.  Slices start on
    # sublane-tile boundaries (in_p % 8 == 0), so they are free views.
    w1 = p1_ref[:in_p, :]
    b1 = p1_ref[in_p:in_p + 1, :]
    h = jnp.dot(x_ref[...], w1, preferred_element_type=jnp.float32) + b1
    h = jnp.maximum(h, 0.0)

    # layer 2: (B, Hp) @ (Hp, Op) + (1, Op).  hid_p % 8 == 0 -> aligned slices.
    w2 = p2_ref[:hid_p, :]
    b2 = p2_ref[hid_p:hid_p + 1, :]
    y = jnp.dot(h, w2, preferred_element_type=jnp.float32) + b2
    out_ref[...] = y.astype(out_ref.dtype)


def pack_params(w1, b1, w2, b2):
    """One-time packing of (w1,b1,w2,b2) into two padded, lane/sublane-aligned
    f32 arrays.  Weights use the (in, out) convention, i.e. transposed vs.
    torch.nn.Linear storage, so y = relu(x @ W1 + b1) @ W2 + b2.

    Zero padding is exact: padded x columns hit zero rows of W1, padded hidden
    columns stay 0 through ReLU and meet zero rows of W2, so output columns
    [:output_dim] equal the unpadded result.
    """
    in_dim, hidden = w1.shape
    out_dim = w2.shape[1]
    in_p = _round_up(in_dim, SUBLANE)      # 4  -> 8
    hid_p = _round_up(hidden, SUBLANE)     # 10 -> 16 (not 128: never hits HBM)
    out_p = _round_up(out_dim, LANE)       # 2  -> 128 (lane-dense output store)

    f32 = jnp.float32
    p1 = jnp.zeros((in_p + 1, hid_p), f32)
    p1 = p1.at[:in_dim, :hidden].set(w1.astype(f32))
    p1 = p1.at[in_p, :hidden].set(b1.astype(f32))          # bias on row in_p

    p2 = jnp.zeros((hid_p + 1, out_p), f32)
    p2 = p2.at[:hidden, :out_dim].set(w2.astype(f32))
    p2 = p2.at[hid_p, :out_dim].set(b2.astype(f32))        # bias on row hid_p

    return p1, p2, out_dim


@functools.partial(jax.jit, static_argnames=("out_dim",))
def policy_forward_packed(x, params1, params2, out_dim):
    """Jitted forward: pad x, run the grid-less Pallas kernel, slice the real
    output columns.  The pad and slice fuse into the same executable, so the
    per-call cost is essentially just the kernel launch + a few KiB of DMA."""
    batch, in_dim = x.shape
    in_p = params1.shape[0] - 1
    hid_p = params2.shape[0] - 1
    out_p = params2.shape[1]

    xp = jnp.zeros((batch, in_p), jnp.float32).at[:, :in_dim].set(
        x.astype(jnp.float32))

    flops = 2 * batch * (in_p * params1.shape[1] + hid_p * out_p)
    bytes_accessed = 4 * (batch * in_p + params1.size + params2.size
                          + batch * out_p)

    y_pad = pl.pallas_call(
        policy_kernel,
        out_shape=jax.ShapeDtypeStruct((batch, out_p), jnp.float32),
        in_specs=[
            pl.BlockSpec(memory_space=pltpu.MemorySpace.VMEM),
            pl.BlockSpec(memory_space=pltpu.MemorySpace.VMEM),
            pl.BlockSpec(memory_space=pltpu.MemorySpace.VMEM),
        ],
        out_specs=pl.BlockSpec(memory_space=pltpu.MemorySpace.VMEM),
        cost_estimate=pl.CostEstimate(
            flops=flops, transcendentals=0, bytes_accessed=bytes_accessed),
    )(xp, params1, params2)

    # Only the first out_dim columns are real; slice fuses under jit.
    return y_pad[:, :out_dim]


def policy_forward(x, w1, b1, w2, b2):
    """Convenience one-shot entry point (packs params, then runs the jitted
    forward).  For repeated calls, pack once with pack_params and reuse."""
    params1, params2, out_dim = pack_params(w1, b1, w2, b2)
    return policy_forward_packed(x, params1, params2, out_dim)


def init_params(key, input_dim, hidden_dim, output_dim):
    """Deterministic init mimicking nn.Linear's U(-1/sqrt(fan_in), 1/sqrt(fan_in))."""
    k1, k2, k3, k4 = jax.random.split(key, 4)
    bound1 = 1.0 / jnp.sqrt(input_dim)
    bound2 = 1.0 / jnp.sqrt(hidden_dim)
    w1 = jax.random.uniform(k1, (input_dim, hidden_dim), jnp.float32,
                            minval=-bound1, maxval=bound1)
    b1 = jax.random.uniform(k2, (hidden_dim,), jnp.float32,
                            minval=-bound1, maxval=bound1)
    w2 = jax.random.uniform(k3, (hidden_dim, output_dim), jnp.float32,
                            minval=-bound2, maxval=bound2)
    b2 = jax.random.uniform(k4, (output_dim,), jnp.float32,
                            minval=-bound2, maxval=bound2)
    return w1, b1, w2, b2


if __name__ == "__main__":
    # Policy-gradient MLP shapes (CartPole-like): batch=8 observations,
    # input_dim=4 features, hidden=10, output_dim=2 actions.
    batch, input_dim, hidden_dim, output_dim = 8, 4, 10, 2

    key = jax.random.PRNGKey(0)
    kx, kp = jax.random.split(key)
    x = jax.random.normal(kx, (batch, input_dim), dtype=jnp.float32)
    w1, b1, w2, b2 = init_params(kp, input_dim, hidden_dim, output_dim)

    # Pack parameters once (init-time work), then run the jitted forward.
    params1, params2, out_dim = pack_params(w1, b1, w2, b2)
    out = policy_forward_packed(x, params1, params2, out_dim)
    out = jax.block_until_ready(out)

    # Pure-JAX reference check (full f32 path -> tight tolerance).
    ref = jnp.maximum(x @ w1 + b1[None, :], 0.0) @ w2 + b2[None, :]
    assert out.shape == (batch, output_dim)
    assert jnp.allclose(out, ref, atol=1e-5, rtol=1e-5)

    print("KERNEL_OK")
</pallas_src>

<mosaic_0001>
module attributes {stable_mosaic.version = 11 : i64} {
  func.func @policy_kernel(%arg0: memref<8x8xf32, #tpu.memory_space<vmem>>, %arg1: memref<9x16xf32, #tpu.memory_space<vmem>>, %arg2: memref<17x128xf32, #tpu.memory_space<vmem>>, %arg3: memref<8x128xf32, #tpu.memory_space<vmem>>) attributes {dimension_semantics = [], scalar_prefetch = 0 : i64, scratch_operands = 0 : i64, tpu.core_type = #tpu.core_type<tc>} {
    %c0 = arith.constant 0 : index
    %c0_0 = arith.constant 0 : index
    %0 = vector.load %arg1[%c0, %c0_0] : memref<9x16xf32, #tpu.memory_space<vmem>>, vector<8x16xf32>
    %c8 = arith.constant 8 : index
    %c0_1 = arith.constant 0 : index
    %1 = vector.load %arg1[%c8, %c0_1] : memref<9x16xf32, #tpu.memory_space<vmem>>, vector<1x16xf32>
    %c0_2 = arith.constant 0 : index
    %c0_3 = arith.constant 0 : index
    %2 = vector.load %arg0[%c0_2, %c0_3] : memref<8x8xf32, #tpu.memory_space<vmem>>, vector<8x8xf32>
    %cst = arith.constant dense<0.000000e+00> : vector<8x16xf32>
    %3 = tpu.matmul %2, %0, %cst {dimension_numbers = #tpu.dot_dimension_numbers<[1], [0], [0], [1], [0, 0, 1, 1], [], []>} : vector<8x8xf32>, vector<8x16xf32>, vector<8x16xf32> -> vector<8x16xf32>
    %4 = vector.broadcast %1 : vector<1x16xf32> to vector<8x16xf32>
    %5 = arith.addf %3, %4 : vector<8x16xf32>
    %cst_4 = arith.constant 0.000000e+00 : f32
    %6 = vector.broadcast %cst_4 : f32 to vector<8x16xf32>
    %7 = arith.maximumf %5, %6 : vector<8x16xf32>
    %c0_5 = arith.constant 0 : index
    %c0_6 = arith.constant 0 : index
    %8 = vector.load %arg2[%c0_5, %c0_6] : memref<17x128xf32, #tpu.memory_space<vmem>>, vector<16x128xf32>
    %c16 = arith.constant 16 : index
    %c0_7 = arith.constant 0 : index
    %9 = vector.load %arg2[%c16, %c0_7] : memref<17x128xf32, #tpu.memory_space<vmem>>, vector<1x128xf32>
    %cst_8 = arith.constant dense<0.000000e+00> : vector<8x128xf32>
    %10 = tpu.matmul %7, %8, %cst_8 {dimension_numbers = #tpu.dot_dimension_numbers<[1], [0], [0], [1], [0, 0, 1, 1], [], []>} : vector<8x16xf32>, vector<16x128xf32>, vector<8x128xf32> -> vector<8x128xf32>
    %11 = vector.broadcast %9 : vector<1x128xf32> to vector<8x128xf32>
    %12 = arith.addf %10, %11 : vector<8x128xf32>
    %c0_9 = arith.constant 0 : index
    %c0_10 = arith.constant 0 : index
    %13 = vector.load %arg3[%c0_9, %c0_10] : memref<8x128xf32, #tpu.memory_space<vmem>>, vector<8x128xf32>
    tpu.vector_store %arg3[%c0_9, %c0_10], %12 {strides = array<i32>} : memref<8x128xf32, #tpu.memory_space<vmem>>, vector<8x128xf32>,
    return
  }
}

</mosaic_0001>

<llo_original>
// kernel: policy_forward_packed.1
$region0: #{policy_forward_packed.1}
  #allocation0 [shape = 'u32[]', space=smem, size = 0x4, offset = 0x4, fixed_abs, tag = 'smem constant byte address 0x4 - core index']
  #allocation1 [shape = 'u32[144,128]{1,0:T(1,128)}', space=vmem, size = 0x12000, scoped, tag = 'internal scratch']
  %s0 = inlined_call_operand.vmem [shape: f32[8,8], index: 0, kind: input, shape index: {}]
  %s1 = inlined_call_operand.vmem [shape: f32[9,16], index: 1, kind: input, shape index: {}]
  %s2 = inlined_call_operand.vmem [shape: f32[17,128], index: 2, kind: input, shape index: {}]
  %s3 = inlined_call_operand.vmem [shape: f32[8,128], index: 3, kind: output, shape index: {}]
  %s4 = sld [smem:[#allocation0]]
  $region22: #{policy_forward_packed.1} parent=0
    _
  %s6 = ssub.s32 1, %s4
  %s7 = scalar_select 0, %s6, %s4
  // Predicated region
  $region2: #{policy_forward_packed.1} parent=0 // pred_check
    _
  $region3: #{policy_forward_packed.1} parent=0 // pred_check_branch
    %9 = sbr.rel (0) target = $region5
  $region4: #{policy_forward_packed.1} parent=0 // pred_region
    _
  $region5: #{policy_forward_packed.1} parent=0 // pred_fallthru
    _
  // Predicated region
  $region6: #{policy_forward_packed.1} parent=0 // pred_check
    _
  $region7: #{policy_forward_packed.1} parent=0 // pred_check_branch
    %11 = sbr.rel (0) target = $region9
  $region8: #{policy_forward_packed.1} parent=0 // pred_region
    _
  $region9: #{policy_forward_packed.1} parent=0 // pred_fallthru
    _
  // Predicated region
  $region10: #{policy_forward_packed.1} parent=0 // pred_check
    _
  $region11: #{policy_forward_packed.1} parent=0 // pred_check_branch
    %13 = sbr.rel (0) target = $region13
  $region12: #{policy_forward_packed.1} parent=0 // pred_region
    _
  $region13: #{policy_forward_packed.1} parent=0 // pred_fallthru
    _
  %v14 = vld [vmem:[%s1] sm:$0xff]
  %v15 = vld [vmem:[%s1 + $0x8] sm:$0x1]
  %v16 = vld [vmem:[%s0] sm:$0xff]
  %v17 = vlaneseq
  %v18 = vshrl.u32 %v17, 7
  %v19 = vsub.s32 0, %v18
  %v20 = vrot.slane %v15, %v19
  %vm21 = vcmask 64512
  %v23 = vsel %vm21, %v16, 0
  %25 = vmatprep.subr.mxu0 0.0
  %26 = vmatpush1.msra.mxu0 %v14
  %27 = vmatprep.subr.mxu0 0.0
  %28 = vmatpush1.msra.mxu0 0.0
  %29 = vmatprep.subr.mxu0 0.0
  %30 = vmatpush1.msra.mxu0 0.0
  %31 = vmatprep.subr.mxu0 0.0
  %32 = vmatpush1.msra.mxu0 0.0
  %33 = vmatprep.subr.mxu0 0.0
  %34 = vmatpush1.msra.mxu0 0.0
  %35 = vmatprep.subr.mxu0 0.0
  %36 = vmatpush1.msra.mxu0 0.0
  %37 = vmatprep.subr.mxu0 0.0
  %38 = vmatpush1.msra.mxu0 0.0
  %39 = vmatprep.subr.mxu0 0.0
  %40 = vmatpush1.msra.mxu0 0.0
  %41 = vmatprep.subr.mxu0 0.0
  %42 = vmatpush1.msra.mxu0 0.0
  %43 = vmatprep.subr.mxu0 0.0
  %44 = vmatpush1.msra.mxu0 0.0
  %45 = vmatprep.subr.mxu0 0.0
  %46 = vmatpush1.msra.mxu0 0.0
  %47 = vmatprep.subr.mxu0 0.0
  %48 = vmatpush1.msra.mxu0 0.0
  %49 = vmatprep.subr.mxu0 0.0
  %50 = vmatpush1.msra.mxu0 0.0
  %51 = vmatprep.subr.mxu0 0.0
  %52 = vmatpush1.msra.mxu0 0.0
  %53 = vmatprep.subr.mxu0 0.0
  %54 = vmatpush1.msra.mxu0 0.0
  %55 = vmatprep.subr.mxu0 0.0
  %56 = vmatpush1.msra.mxu0 0.0
  %57 = vmatprep.subr.mxu0 0.0
  %58 = vmatpush1.msra.mxu0 0.0
  %59 = vmatprep.subr.mxu0 0.0
  %60 = vmatpush1.msra.mxu0 0.0
  %61 = vmatprep.subr.mxu0 0.0
  %62 = vmatpush1.msra.mxu0 0.0
  %63 = vmatprep.subr.mxu0 0.0
  %64 = vmatpush1.msra.mxu0 0.0
  %65 = vmatprep.subr.mxu0 0.0
  %66 = vmatpush1.msra.mxu0 0.0
  %67 = vmatprep.subr.mxu0 0.0
  %68 = vmatpush1.msra.mxu0 0.0
  %69 = vmatprep.subr.mxu0 0.0
  %70 = vmatpush1.msra.mxu0 0.0
  %71 = vmatprep.subr.mxu0 0.0
  %72 = vmatpush1.msra.mxu0 0.0
  %73 = vmatprep.subr.mxu0 0.0
  %74 = vmatpush1.msra.mxu0 0.0
  %75 = vmatprep.subr.mxu0 0.0
  %76 = vmatpush1.msra.mxu0 0.0
  %77 = vmatprep.subr.mxu0 0.0
  %78 = vmatpush1.msra.mxu0 0.0
  %79 = vmatprep.subr.mxu0 0.0
  %80 = vmatpush1.msra.mxu0 0.0
  %81 = vmatprep.subr.mxu0 0.0
  %82 = vmatpush1.msra.mxu0 0.0
  %83 = vmatprep.subr.mxu0 0.0
  %84 = vmatpush1.msra.mxu0 0.0
  %85 = vmatprep.subr.mxu0 0.0
  %86 = vmatpush1.msra.mxu0 0.0
  %87 = vmatprep.subr.mxu0 0.0
  %88 = vmatpush1.msra.mxu0 0.0
  %89 = vmatprep.mubr.f32.mxu0 0.0
  %90 = vmatmul.mubr.f32.gmra.mrb[0].mxu0 %v23
  %v91 = vpop.f32.mrb[0].mxu0
  %v92 = vadd.f32 %v20, %v91
  %v93 = vpop.f32.mrb[0].mxu0
  %94 = vdwg.mxu0
  %v95 = vmax.f32 %v92, 0.0
  %v96 = vld [vmem:[%s2] sm:$0xff]
  %v97 = vld [vmem:[%s2 + $0x8] sm:$0xff]
  %v98 = vld [vmem:[%s2 + $0x10] sm:$0x1]
  %v99 = vlaneseq
  %v100 = vshrl.u32 %v99, 7
  %v101 = vsub.s32 0, %v100
  %v102 = vrot.slane %v98, %v101
  %vm103 = vcmask 130048
  %v105 = vsel %vm103, %v95, 0
  %107 = vmatprep.subr.mxu0 0.0
  %108 = vmatpush1.msra.mxu0 %v96
  %109 = vmatprep.subr.mxu0 0.0
  %110 = vmatpush1.msra.mxu0 %v97
  %111 = vmatprep.subr.mxu0 0.0
  %112 = vmatpush1.msra.mxu0 0.0
  %113 = vmatprep.subr.mxu0 0.0
  %114 = vmatpush1.msra.mxu0 0.0
  %115 = vmatprep.subr.mxu0 0.0
  %116 = vmatpush1.msra.mxu0 0.0
  %117 = vmatprep.subr.mxu0 0.0
  %118 = vmatpush1.msra.mxu0 0.0
  %119 = vmatprep.subr.mxu0 0.0
  %120 = vmatpush1.msra.mxu0 0.0
  %121 = vmatprep.subr.mxu0 0.0
  %122 = vmatpush1.msra.mxu0 0.0
  %123 = vmatprep.subr.mxu0 0.0
  %124 = vmatpush1.msra.mxu0 0.0
  %125 = vmatprep.subr.mxu0 0.0
  %126 = vmatpush1.msra.mxu0 0.0
  %127 = vmatprep.subr.mxu0 0.0
  %128 = vmatpush1.msra.mxu0 0.0
  %129 = vmatprep.subr.mxu0 0.0
  %130 = vmatpush1.msra.mxu0 0.0
  %131 = vmatprep.subr.mxu0 0.0
  %132 = vmatpush1.msra.mxu0 0.0
  %133 = vmatprep.subr.mxu0 0.0
  %134 = vmatpush1.msra.mxu0 0.0
  %135 = vmatprep.subr.mxu0 0.0
  %136 = vmatpush1.msra.mxu0 0.0
  %137 = vmatprep.subr.mxu0 0.0
  %138 = vmatpush1.msra.mxu0 0.0
  %139 = vmatprep.subr.mxu0 0.0
  %140 = vmatpush1.msra.mxu0 0.0
  %141 = vmatprep.subr.mxu0 0.0
  %142 = vmatpush1.msra.mxu0 0.0
  %143 = vmatprep.subr.mxu0 0.0
  %144 = vmatpush1.msra.mxu0 0.0
  %145 = vmatprep.subr.mxu0 0.0
  %146 = vmatpush1.msra.mxu0 0.0
  %147 = vmatprep.subr.mxu0 0.0
  %148 = vmatpush1.msra.mxu0 0.0
  %149 = vmatprep.subr.mxu0 0.0
  %150 = vmatpush1.msra.mxu0 0.0
  %151 = vmatprep.subr.mxu0 0.0
  %152 = vmatpush1.msra.mxu0 0.0
  %153 = vmatprep.subr.mxu0 0.0
  %154 = vmatpush1.msra.mxu0 0.0
  %155 = vmatprep.subr.mxu0 0.0
  %156 = vmatpush1.msra.mxu0 0.0
  %157 = vmatprep.subr.mxu0 0.0
  %158 = vmatpush1.msra.mxu0 0.0
  %159 = vmatprep.subr.mxu0 0.0
  %160 = vmatpush1.msra.mxu0 0.0
  %161 = vmatprep.subr.mxu0 0.0
  %162 = vmatpush1.msra.mxu0 0.0
  %163 = vmatprep.subr.mxu0 0.0
  %164 = vmatpush1.msra.mxu0 0.0
  %165 = vmatprep.subr.mxu0 0.0
  %166 = vmatpush1.msra.mxu0 0.0
  %167 = vmatprep.subr.mxu0 0.0
  %168 = vmatpush1.msra.mxu0 0.0
  %169 = vmatprep.subr.mxu0 0.0
  %170 = vmatpush1.msra.mxu0 0.0
  %171 = vmatprep.mubr.f32.mxu0 0.0
  %172 = vmatmul.mubr.f32.gmra.mrb[0].mxu0 %v105
  %v173 = vpop.f32.mrb[0].mxu0
  %v174 = vadd.f32 %v102, %v173
  %v175 = vpop.f32.mrb[0].mxu0
  %176 = vdwg.mxu0
  %177 = vst [vmem:[%s3] sm:$0xff] %v174
  // Predicated region
  $region14: #{policy_forward_packed.1} parent=0 // pred_check
    _
  $region15: #{policy_forward_packed.1} parent=0 // pred_check_branch
    %179 = sbr.rel (0) target = $region17
  $region16: #{policy_forward_packed.1} parent=0 // pred_region
    _
  $region17: #{policy_forward_packed.1} parent=0 // pred_fallthru
    _
  // Predicated region
  $region18: #{policy_forward_packed.1} parent=0 // pred_check
    _
  $region19: #{policy_forward_packed.1} parent=0 // pred_check_branch
    %181 = sbr.rel (0) target = $region21
  $region20: #{policy_forward_packed.1} parent=0 // pred_region
    _
  $region21: #{policy_forward_packed.1} parent=0 // pred_fallthru
    _

</llo_original>
